<compile_context>
chip_gen: v5e
topology: v5e:2x2
jax: 0.10.0
libtpu: 0.0.40
codegen_flags: <defaults>
</compile_context>

<pallas_src>
import functools

import jax
import jax.numpy as jnp
from jax.experimental import pallas as pl
from jax.experimental.pallas import tpu as pltpu

# ---- module "config" (mirrors PerturbModelTwo.__init__ arguments) -----------
PERT_RATIO = 0.5
TARGET_PERTURBATIONS = [
    {"index": 1, "positive": True},
    {"index": 5, "positive": False},
]

# small shapes for the synthetic inner model
B, C_IN, C_OUT, H, W = 2, 4, 8, 16, 16


def perturb_kernel(x_ref, w_ref, b_ref, *rest, targets):
    """Single invocation over the whole (lane-dense) problem.

    x_ref     : VMEM (B, Cin,  HW)   input, spatial flattened on lanes
    w_ref     : VMEM (1, Cout, Cin)  1x1-conv weight
    b_ref     : VMEM (1, Cout, 1)    bias
    noise_ref : VMEM (B, T,    HW)   N(0, pert_ratio) noise, target rows only
                (present only if `targets` is non-empty)
    out_ref   : VMEM (B, Cout, HW)
    targets   : static tuple of (channel_index, sign) pairs
    """
    if targets:
        noise_ref, out_ref = rest
    else:
        (out_ref,) = rest

    x = x_ref[...]            # (B, Cin, HW)
    w = w_ref[...]            # (1, Cout, Cin)
    c_in = w.shape[2]

    # 1x1 conv == per-pixel channel matmul, unrolled as VPU broadcast-FMAs
    # (exact f32, no MXU round-trip latency). Bias folded into the first term.
    logits = b_ref[...] + w[:, :, 0:1] * x[:, 0:1, :]          # (B, Cout, HW)
    for ci in range(1, c_in):
        logits = logits + w[:, :, ci:ci + 1] * x[:, ci:ci + 1, :]

    # Full lane-dense store of the unperturbed logits (clone semantics).
    out_ref[...] = logits.astype(out_ref.dtype)

    # Targeted channels get +|noise| / -|noise| as static row-slice overwrites
    # (no one-hot broadcast-FMA over the whole (Cout, HW) slab). Untargeted
    # rows keep the exact conv result.
    for t, (idx, sign) in enumerate(targets):
        noisy = (logits[:, idx:idx + 1, :]
                 + sign * jnp.abs(noise_ref[:, t:t + 1, :]))
        out_ref[:, idx:idx + 1, :] = noisy.astype(out_ref.dtype)


def make_perturb_model_two(pert_ratio, target_perturbations):
    """Builds the jitted forward pass. Static config is baked in at trace time."""
    targets = tuple((int(p["index"]), 1.0 if p["positive"] else -1.0)
                    for p in target_perturbations)
    n_targets = len(targets)

    kernel = functools.partial(perturb_kernel, targets=targets)
    vmem_spec = pl.BlockSpec(memory_space=pltpu.MemorySpace.VMEM)

    @jax.jit
    def forward(x_nchw, weight, bias, noise_key):
        b, c_in, h, w_sp = x_nchw.shape
        c_out = weight.shape[0]
        hw = h * w_sp

        # Native layout: only cheap last-two-dim reshapes, no transposes.
        x3 = x_nchw.astype(jnp.float32).reshape(b, c_in, hw)
        w3 = weight.astype(jnp.float32).reshape(1, c_out, c_in)
        b3 = bias.astype(jnp.float32).reshape(1, c_out, 1)

        inputs = [x3, w3, b3]
        in_specs = [vmem_spec, vmem_spec, vmem_spec]

        if n_targets > 0:
            # i.i.d. N(0, pert_ratio) noise, drawn ONLY for targeted channels.
            # torch.normal(mean=0, std=pert_ratio) semantics -> scale by std.
            noise = (jax.random.normal(noise_key, (b, n_targets, hw),
                                       dtype=jnp.float32) * pert_ratio)
            inputs.append(noise)
            in_specs.append(vmem_spec)

        out3 = pl.pallas_call(
            kernel,
            out_shape=jax.ShapeDtypeStruct((b, c_out, hw), jnp.float32),
            # No grid: whole ~30 KB working set sits in VMEM once, no
            # pipelining scaffolding / double-buffering.
            in_specs=in_specs,
            out_specs=vmem_spec,
        )(*inputs)

        return out3.reshape(b, c_out, h, w_sp)

    return forward


if __name__ == "__main__":
    key = jax.random.PRNGKey(0)
    kx, kw, kb, kn = jax.random.split(key, 4)

    # deterministic inputs / parameters
    x_nchw = jax.random.normal(kx, (B, C_IN, H, W), dtype=jnp.float32)
    weight = jax.random.normal(kw, (C_OUT, C_IN), dtype=jnp.float32) * 0.1
    bias = jax.random.normal(kb, (C_OUT,), dtype=jnp.float32) * 0.1

    forward = make_perturb_model_two(PERT_RATIO, TARGET_PERTURBATIONS)
    out = forward(x_nchw, weight, bias, kn)
    jax.block_until_ready(out)
    assert out.shape == (B, C_OUT, H, W)

    # ---- light sanity checks against a pure-JAX reference of the inner model
    logits_ref = (jnp.einsum("oc,bchw->bohw", weight, x_nchw,
                             precision=jax.lax.Precision.HIGHEST)
                  + bias.reshape(1, C_OUT, 1, 1))
    delta = out - logits_ref

    target_idx = [p["index"] for p in TARGET_PERTURBATIONS]
    untouched = [c for c in range(C_OUT) if c not in target_idx]
    assert jnp.allclose(out[:, untouched], logits_ref[:, untouched],
                        atol=1e-4, rtol=1e-4), "untargeted channels modified"
    for pert in TARGET_PERTURBATIONS:
        d = delta[:, pert["index"]]
        if pert["positive"]:
            assert bool(jnp.all(d >= -1e-4)), "positive perturbation went negative"
        else:
            assert bool(jnp.all(d <= 1e-4)), "negative perturbation went positive"
        assert float(jnp.mean(jnp.abs(d))) > 0.0, "target channel not perturbed"

    print("KERNEL_OK")
</pallas_src>

<mosaic_0001>
module attributes {stable_mosaic.version = 11 : i64} {
  func.func @perturb_kernel(%arg0: memref<2x4x256xf32, #tpu.memory_space<vmem>>, %arg1: memref<1x8x4xf32, #tpu.memory_space<vmem>>, %arg2: memref<1x8x1xf32, #tpu.memory_space<vmem>>, %arg3: memref<2x2x256xf32, #tpu.memory_space<vmem>>, %arg4: memref<2x8x256xf32, #tpu.memory_space<vmem>>) attributes {dimension_semantics = [], scalar_prefetch = 0 : i64, scratch_operands = 0 : i64, tpu.core_type = #tpu.core_type<tc>} {
    %c0 = arith.constant 0 : index
    %c0_0 = arith.constant 0 : index
    %c0_1 = arith.constant 0 : index
    %0 = vector.load %arg0[%c0, %c0_0, %c0_1] : memref<2x4x256xf32, #tpu.memory_space<vmem>>, vector<2x4x256xf32>
    %c0_2 = arith.constant 0 : index
    %c0_3 = arith.constant 0 : index
    %c0_4 = arith.constant 0 : index
    %1 = vector.load %arg1[%c0_2, %c0_3, %c0_4] : memref<1x8x4xf32, #tpu.memory_space<vmem>>, vector<1x8x4xf32>
    %c0_5 = arith.constant 0 : index
    %c0_6 = arith.constant 0 : index
    %c0_7 = arith.constant 0 : index
    %2 = vector.load %arg2[%c0_5, %c0_6, %c0_7] : memref<1x8x1xf32, #tpu.memory_space<vmem>>, vector<1x8x1xf32>
    %3 = vector.extract_strided_slice %1 {offsets = [0, 0, 0], sizes = [1, 8, 1], strides = [1, 1, 1]} : vector<1x8x4xf32> to vector<1x8x1xf32>
    %4 = vector.extract_strided_slice %0 {offsets = [0, 0, 0], sizes = [2, 1, 256], strides = [1, 1, 1]} : vector<2x4x256xf32> to vector<2x1x256xf32>
    %5 = vector.broadcast %3 : vector<1x8x1xf32> to vector<2x8x256xf32>
    %6 = vector.broadcast %4 : vector<2x1x256xf32> to vector<2x8x256xf32>
    %7 = arith.mulf %5, %6 : vector<2x8x256xf32>
    %8 = vector.broadcast %2 : vector<1x8x1xf32> to vector<2x8x256xf32>
    %9 = arith.addf %8, %7 : vector<2x8x256xf32>
    %10 = vector.extract_strided_slice %1 {offsets = [0, 0, 1], sizes = [1, 8, 1], strides = [1, 1, 1]} : vector<1x8x4xf32> to vector<1x8x1xf32>
    %11 = vector.extract_strided_slice %0 {offsets = [0, 1, 0], sizes = [2, 1, 256], strides = [1, 1, 1]} : vector<2x4x256xf32> to vector<2x1x256xf32>
    %12 = vector.broadcast %10 : vector<1x8x1xf32> to vector<2x8x256xf32>
    %13 = vector.broadcast %11 : vector<2x1x256xf32> to vector<2x8x256xf32>
    %14 = arith.mulf %12, %13 : vector<2x8x256xf32>
    %15 = arith.addf %9, %14 : vector<2x8x256xf32>
    %16 = vector.extract_strided_slice %1 {offsets = [0, 0, 2], sizes = [1, 8, 1], strides = [1, 1, 1]} : vector<1x8x4xf32> to vector<1x8x1xf32>
    %17 = vector.extract_strided_slice %0 {offsets = [0, 2, 0], sizes = [2, 1, 256], strides = [1, 1, 1]} : vector<2x4x256xf32> to vector<2x1x256xf32>
    %18 = vector.broadcast %16 : vector<1x8x1xf32> to vector<2x8x256xf32>
    %19 = vector.broadcast %17 : vector<2x1x256xf32> to vector<2x8x256xf32>
    %20 = arith.mulf %18, %19 : vector<2x8x256xf32>
    %21 = arith.addf %15, %20 : vector<2x8x256xf32>
    %22 = vector.extract_strided_slice %1 {offsets = [0, 0, 3], sizes = [1, 8, 1], strides = [1, 1, 1]} : vector<1x8x4xf32> to vector<1x8x1xf32>
    %23 = vector.extract_strided_slice %0 {offsets = [0, 3, 0], sizes = [2, 1, 256], strides = [1, 1, 1]} : vector<2x4x256xf32> to vector<2x1x256xf32>
    %24 = vector.broadcast %22 : vector<1x8x1xf32> to vector<2x8x256xf32>
    %25 = vector.broadcast %23 : vector<2x1x256xf32> to vector<2x8x256xf32>
    %26 = arith.mulf %24, %25 : vector<2x8x256xf32>
    %27 = arith.addf %21, %26 : vector<2x8x256xf32>
    %c0_8 = arith.constant 0 : index
    %c0_9 = arith.constant 0 : index
    %c0_10 = arith.constant 0 : index
    %28 = vector.load %arg4[%c0_8, %c0_9, %c0_10] : memref<2x8x256xf32, #tpu.memory_space<vmem>>, vector<2x8x256xf32>
    tpu.vector_store %arg4[%c0_8, %c0_9, %c0_10], %27 {strides = array<i32>} : memref<2x8x256xf32, #tpu.memory_space<vmem>>, vector<2x8x256xf32>,
    %29 = vector.extract_strided_slice %27 {offsets = [0, 1, 0], sizes = [2, 1, 256], strides = [1, 1, 1]} : vector<2x8x256xf32> to vector<2x1x256xf32>
    %c0_11 = arith.constant 0 : index
    %c0_12 = arith.constant 0 : index
    %c0_13 = arith.constant 0 : index
    %30 = vector.load %arg3[%c0_11, %c0_12, %c0_13] : memref<2x2x256xf32, #tpu.memory_space<vmem>>, vector<2x1x256xf32>
    %31 = math.absf %30 : vector<2x1x256xf32>
    %cst = arith.constant 1.000000e+00 : f32
    %32 = vector.broadcast %cst : f32 to vector<2x1x256xf32>
    %33 = arith.mulf %32, %31 : vector<2x1x256xf32>
    %34 = arith.addf %29, %33 : vector<2x1x256xf32>
    %c0_14 = arith.constant 0 : index
    %c1 = arith.constant 1 : index
    %c0_15 = arith.constant 0 : index
    %35 = vector.load %arg4[%c0_14, %c1, %c0_15] : memref<2x8x256xf32, #tpu.memory_space<vmem>>, vector<2x1x256xf32>
    tpu.vector_store %arg4[%c0_14, %c1, %c0_15], %34 {strides = array<i32>} : memref<2x8x256xf32, #tpu.memory_space<vmem>>, vector<2x1x256xf32>,
    %36 = vector.extract_strided_slice %27 {offsets = [0, 5, 0], sizes = [2, 1, 256], strides = [1, 1, 1]} : vector<2x8x256xf32> to vector<2x1x256xf32>
    %c0_16 = arith.constant 0 : index
    %c1_17 = arith.constant 1 : index
    %c0_18 = arith.constant 0 : index
    %37 = vector.load %arg3[%c0_16, %c1_17, %c0_18] : memref<2x2x256xf32, #tpu.memory_space<vmem>>, vector<2x1x256xf32>
    %38 = math.absf %37 : vector<2x1x256xf32>
    %cst_19 = arith.constant -1.000000e+00 : f32
    %39 = vector.broadcast %cst_19 : f32 to vector<2x1x256xf32>
    %40 = arith.mulf %39, %38 : vector<2x1x256xf32>
    %41 = arith.addf %36, %40 : vector<2x1x256xf32>
    %c0_20 = arith.constant 0 : index
    %c5 = arith.constant 5 : index
    %c0_21 = arith.constant 0 : index
    %42 = vector.load %arg4[%c0_20, %c5, %c0_21] : memref<2x8x256xf32, #tpu.memory_space<vmem>>, vector<2x1x256xf32>
    tpu.vector_store %arg4[%c0_20, %c5, %c0_21], %41 {strides = array<i32>} : memref<2x8x256xf32, #tpu.memory_space<vmem>>, vector<2x1x256xf32>,
    return
  }
}

</mosaic_0001>

<llo_original>
// kernel: forward.1
$region0: #{forward.1}
  #allocation0 [shape = 'u32[]', space=smem, size = 0x4, offset = 0x4, fixed_abs, tag = 'smem constant byte address 0x4 - core index']
  #allocation1 [shape = 'u32[72,128]{1,0:T(1,128)}', space=vmem, size = 0x9000, scoped, tag = 'internal scratch']
  %s0 = inlined_call_operand.vmem [shape: f32[2,4,256], index: 0, kind: input, shape index: {}]
  %s1 = inlined_call_operand.vmem [shape: f32[1,8,4], index: 1, kind: input, shape index: {}]
  %s2 = inlined_call_operand.vmem [shape: f32[1,8,1], index: 2, kind: input, shape index: {}]
  %s3 = inlined_call_operand.vmem [shape: f32[2,2,256], index: 3, kind: input, shape index: {}]
  %s4 = inlined_call_operand.vmem [shape: f32[2,8,256], index: 4, kind: output, shape index: {}]
  %s5 = sld [smem:[#allocation0]]
  $region26: #{forward.1} parent=0
    _
  %s7 = ssub.s32 1, %s5
  %s8 = scalar_select 0, %s7, %s5
  // Predicated region
  $region2: #{forward.1} parent=0 // pred_check
    _
  $region3: #{forward.1} parent=0 // pred_check_branch
    %10 = sbr.rel (0) target = $region5
  $region4: #{forward.1} parent=0 // pred_region
    _
  $region5: #{forward.1} parent=0 // pred_fallthru
    _
  // Predicated region
  $region6: #{forward.1} parent=0 // pred_check
    _
  $region7: #{forward.1} parent=0 // pred_check_branch
    %12 = sbr.rel (0) target = $region9
  $region8: #{forward.1} parent=0 // pred_region
    _
  $region9: #{forward.1} parent=0 // pred_fallthru
    _
  // Predicated region
  $region10: #{forward.1} parent=0 // pred_check
    _
  $region11: #{forward.1} parent=0 // pred_check_branch
    %14 = sbr.rel (0) target = $region13
  $region12: #{forward.1} parent=0 // pred_region
    _
  $region13: #{forward.1} parent=0 // pred_fallthru
    _
  // Predicated region
  $region14: #{forward.1} parent=0 // pred_check
    _
  $region15: #{forward.1} parent=0 // pred_check_branch
    %16 = sbr.rel (0) target = $region17
  $region16: #{forward.1} parent=0 // pred_region
    _
  $region17: #{forward.1} parent=0 // pred_fallthru
    _
  %v17 = vld [vmem:[%s0] sm:$0xff]
  %v18 = vld [vmem:[%s0 + $0x8] sm:$0xff]
  %v19 = vld [vmem:[%s1] sm:$0xff]
  %v20 = vld [vmem:[%s2] sm:$0xff]
  %22 = vset.pattern.permute.xlu0 0
  %23 = vperm.xlu0 %22, %v19
  %v24 = vpop.permute.xlu0 %23
  %v28 = vperm.slane %v17, 0
  %v29 = vperm.slane %v17, 4
  %v30 = vperm.slane %v18, 0
  %v31 = vperm.slane %v18, 4
  %v36 = vperm.slane %v28, 0
  %v37 = vperm.slane %v29, 0
  %v38 = vperm.slane %v30, 0
  %v39 = vperm.slane %v31, 0
  %v40 = vmul.f32 %v24, %v36
  %v41 = vmul.f32 %v24, %v37
  %v42 = vmul.f32 %v24, %v38
  %v43 = vmul.f32 %v24, %v39
  %45 = vset.pattern.permute.xlu0 0
  %46 = vperm.xlu0 %45, %v20
  %v47 = vpop.permute.xlu0 %46
  %v49 = vadd.f32 %v47, %v40
  %v50 = vadd.f32 %v47, %v41
  %v51 = vadd.f32 %v47, %v42
  %v52 = vadd.f32 %v47, %v43
  %53 = vset.pattern.permute.xlu0 1
  %54 = vperm.xlu0 %53, %v19
  %v55 = vpop.permute.xlu0 %54
  %v57 = vperm.slane %v17, 1
  %v58 = vperm.slane %v17, 5
  %v59 = vperm.slane %v18, 1
  %v60 = vperm.slane %v18, 5
  %v65 = vperm.slane %v57, 1
  %v66 = vperm.slane %v58, 1
  %v67 = vperm.slane %v59, 1
  %v68 = vperm.slane %v60, 1
  %v69 = vmul.f32 %v55, %v65
  %v70 = vmul.f32 %v55, %v66
  %v71 = vmul.f32 %v55, %v67
  %v72 = vmul.f32 %v55, %v68
  %v73 = vadd.f32 %v49, %v69
  %v74 = vadd.f32 %v50, %v70
  %v75 = vadd.f32 %v51, %v71
  %v76 = vadd.f32 %v52, %v72
  %77 = vset.pattern.permute.xlu0 2
  %78 = vperm.xlu0 %77, %v19
  %v79 = vpop.permute.xlu0 %78
  %v81 = vperm.slane %v17, 2
  %v82 = vperm.slane %v17, 6
  %v83 = vperm.slane %v18, 2
  %v84 = vperm.slane %v18, 6
  %v89 = vperm.slane %v81, 2
  %v90 = vperm.slane %v82, 2
  %v91 = vperm.slane %v83, 2
  %v92 = vperm.slane %v84, 2
  %v93 = vmul.f32 %v79, %v89
  %v94 = vmul.f32 %v79, %v90
  %v95 = vmul.f32 %v79, %v91
  %v96 = vmul.f32 %v79, %v92
  %v97 = vadd.f32 %v73, %v93
  %v98 = vadd.f32 %v74, %v94
  %v99 = vadd.f32 %v75, %v95
  %v100 = vadd.f32 %v76, %v96
  %101 = vset.pattern.permute.xlu0 3
  %102 = vperm.xlu0 %101, %v19
  %v103 = vpop.permute.xlu0 %102
  %v105 = vperm.slane %v17, 3
  %v106 = vperm.slane %v17, 7
  %v107 = vperm.slane %v18, 3
  %v108 = vperm.slane %v18, 7
  %v113 = vperm.slane %v105, 3
  %v114 = vperm.slane %v106, 3
  %v115 = vperm.slane %v107, 3
  %v116 = vperm.slane %v108, 3
  %v117 = vmul.f32 %v103, %v113
  %v118 = vmul.f32 %v103, %v114
  %v119 = vmul.f32 %v103, %v115
  %v120 = vmul.f32 %v103, %v116
  %v121 = vadd.f32 %v97, %v117
  %v122 = vadd.f32 %v98, %v118
  %v123 = vadd.f32 %v99, %v119
  %v124 = vadd.f32 %v100, %v120
  %125 = vst [vmem:[%s4] sm:$0xff] %v121
  %126 = vst [vmem:[%s4 + $0x8] sm:$0xff] %v122
  %127 = vst [vmem:[%s4 + $0x10] sm:$0xff] %v123
  %128 = vst [vmem:[%s4 + $0x18] sm:$0xff] %v124
  %v129 = vld [vmem:[%s3] ss:$2 sm:$0x3]
  %s130 = scalar_lea.vmem %s3, 4
  %v131 = vld [vmem:[%s130] ss:$2 sm:$0x3]
  %v132 = vand.u32 2147483647, %v129
  %v133 = vand.u32 2147483647, %v131
  %v136 = vperm.slane %v132, 0
  %v137 = vperm.slane %v132, 1
  %v138 = vperm.slane %v133, 0
  %v139 = vperm.slane %v133, 1
  %v144 = vadd.f32 %v121, %v136
  %v145 = vadd.f32 %v122, %v137
  %v146 = vadd.f32 %v123, %v138
  %v147 = vadd.f32 %v124, %v139
  %152 = vst [vmem:[#allocation1] sm:$0xff] %v144
  %153 = vst [vmem:[#allocation1 + $0x9] sm:$0xff] %v145
  %s154 = scalar_lea.vmem [#allocation1], 1
  %v155 = vld [vmem:[%s154] ss:$9 sm:$0xff]
  %156 = vst [vmem:[#allocation1] sm:$0xff] %v146
  %157 = vst [vmem:[#allocation1 + $0x9] sm:$0xff] %v147
  %v158 = vld [vmem:[%s154] ss:$9 sm:$0xff]
  %v161 = vlaneseq
  %vm162 = vcmp.ge.s32.totalorder %v161, 0
  %vm163 = vcmp.lt.s32.totalorder %v161, 256
  %vm164 = vmand %vm162, %vm163
  %s165 = scalar_lea.vmem %s4, 1
  %166 = vst.msk [vmem:[%s165] ss:$8 sm:$0x3] %vm164, %v155
  %167 = vst.msk [vmem:[%s165] ss:$8 sm:$0x0] %vm164, %v155
  %s168 = scalar_lea.vmem %s4, 17
  %169 = vst.msk [vmem:[%s168] ss:$8 sm:$0x3] %vm164, %v158
  %170 = vst.msk [vmem:[%s168] ss:$8 sm:$0x0] %vm164, %v158
  %s171 = scalar_lea.vmem %s3, 1
  %v172 = vld [vmem:[%s171] ss:$2 sm:$0x3]
  %s173 = scalar_lea.vmem %s3, 5
  %v174 = vld [vmem:[%s173] ss:$2 sm:$0x3]
  %v175 = vand.u32 2147483647, %v172
  %v176 = vand.u32 2147483647, %v174
  %v177 = vmul.f32 %v175, -1.0
  %v178 = vmul.f32 %v176, -1.0
  %v181 = vperm.slane %v177, 0
  %v182 = vperm.slane %v177, 1
  %v183 = vperm.slane %v178, 0
  %v184 = vperm.slane %v178, 1
  %v189 = vadd.f32 %v121, %v181
  %v190 = vadd.f32 %v122, %v182
  %v191 = vadd.f32 %v123, %v183
  %v192 = vadd.f32 %v124, %v184
  %197 = vst [vmem:[#allocation1] sm:$0xff] %v189
  %198 = vst [vmem:[#allocation1 + $0x9] sm:$0xff] %v190
  %s199 = scalar_lea.vmem [#allocation1], 5
  %v200 = vld [vmem:[%s199] ss:$9 sm:$0xff]
  %201 = vst [vmem:[#allocation1] sm:$0xff] %v191
  %202 = vst [vmem:[#allocation1 + $0x9] sm:$0xff] %v192
  %v203 = vld [vmem:[%s199] ss:$9 sm:$0xff]
  %s206 = scalar_lea.vmem %s4, 5
  %207 = vst.msk [vmem:[%s206] ss:$8 sm:$0x3] %vm164, %v200
  %208 = vst.msk [vmem:[%s206] ss:$8 sm:$0x0] %vm164, %v200
  %s209 = scalar_lea.vmem %s4, 21
  %210 = vst.msk [vmem:[%s209] ss:$8 sm:$0x3] %vm164, %v203
  %211 = vst.msk [vmem:[%s209] ss:$8 sm:$0x0] %vm164, %v203
  // Predicated region
  $region18: #{forward.1} parent=0 // pred_check
    _
  $region19: #{forward.1} parent=0 // pred_check_branch
    %213 = sbr.rel (0) target = $region21
  $region20: #{forward.1} parent=0 // pred_region
    _
  $region21: #{forward.1} parent=0 // pred_fallthru
    _
  // Predicated region
  $region22: #{forward.1} parent=0 // pred_check
    _
  $region23: #{forward.1} parent=0 // pred_check_branch
    %215 = sbr.rel (0) target = $region25
  $region24: #{forward.1} parent=0 // pred_region
    _
  $region25: #{forward.1} parent=0 // pred_fallthru
    _

</llo_original>
